<compile_context>
chip_gen: v7x
topology: tpu7x:2x2x1
jax: 0.10.0
libtpu: 0.0.40
codegen_flags: <defaults>
</compile_context>

<pallas_src>
import functools

import jax
import jax.numpy as jnp
from jax import lax
from jax.experimental import pallas as pl
from jax.experimental.pallas import tpu as pltpu


# ----------------------------------------------------------------------------
# generation-aware VMEM budgets
# ----------------------------------------------------------------------------
def _tpu_vmem_bytes():
    try:
        info = pltpu.get_tpu_info()
        cap = int(getattr(info, "vmem_capacity_bytes", 0) or 0)
        if cap > 0:
            return cap
    except Exception:
        pass
    return 64 * 1024 * 1024  # conservative default (v7x: 64 MiB / TC)


_VMEM_PHYS = _tpu_vmem_bytes()
_LARGE_VMEM = _VMEM_PHYS >= 96 * 1024 * 1024          # v5e / v6e (128 MiB)
_VMEM_LIMIT = max(32 * 1024 * 1024,
                  min(int(_VMEM_PHYS * 3 // 4), _VMEM_PHYS - 16 * 1024 * 1024))
_BLOCK_BUDGET = 24 * 1024 * 1024 if _LARGE_VMEM else 8 * 1024 * 1024
_TB_CAP = 1024 if _LARGE_VMEM else 512
_TM_CAP = 512 if _LARGE_VMEM else 256
_TN_CAP = 512 if _LARGE_VMEM else 256


# ----------------------------------------------------------------------------
# small in-kernel helpers (pure jnp, traced inside the Pallas bodies)
# ----------------------------------------------------------------------------
def _log_sigmoid(x):
    # stable: log(sigmoid(x)) = min(x, 0) - log1p(exp(-|x|))
    return jnp.minimum(x, 0.0) - jnp.log1p(jnp.exp(-jnp.abs(x)))


def _sigmoid(x):
    z = jnp.exp(-jnp.abs(x))
    return jnp.where(x >= 0.0, 1.0, z) / (1.0 + z)


def _normalize_last(x):
    # matches F.normalize(x, p=2, dim=-1) with eps=1e-12
    ss = jnp.sum(x * x, axis=-1, keepdims=True)
    return x * lax.rsqrt(jnp.maximum(ss, 1e-24))


# ----------------------------------------------------------------------------
# Pallas kernels
# ----------------------------------------------------------------------------
def _kg_loss_kernel(meta_ref, rel_ref, h_ref, pos_ref, neg_ref, wr_ref, out_ref,
                    *, kg_l2loss_lambda):
    s = pl.program_id(0)
    tb = h_ref.shape[0]
    row_block = meta_ref[1, s]
    row_start = meta_ref[2, s]
    row_end = meta_ref[3, s]

    w = wr_ref[0]                                        # (D, R) — ONE relation
    # MXU-shaped grouped projections: (TB, D) @ (D, R)
    proj_h = jnp.dot(h_ref[...], w, preferred_element_type=jnp.float32)
    proj_p = jnp.dot(pos_ref[...], w, preferred_element_type=jnp.float32)
    proj_n = jnp.dot(neg_ref[...], w, preferred_element_type=jnp.float32)

    r_n = _normalize_last(rel_ref[0].astype(jnp.float32))   # (1, R), broadcast
    h_n = _normalize_last(proj_h)
    p_n = _normalize_last(proj_p)
    n_n = _normalize_last(proj_n)

    pos_diff = h_n + r_n - p_n
    neg_diff = h_n + r_n - n_n
    pos_score = jnp.sum(pos_diff * pos_diff, axis=1, keepdims=True)   # (TB, 1)
    neg_score = jnp.sum(neg_diff * neg_diff, axis=1, keepdims=True)   # (TB, 1)

    kg_row = -_log_sigmoid(neg_score - pos_score)
    # reference regularises the *normalized* tensors
    l2_row = 0.5 * (jnp.sum(h_n * h_n, axis=1, keepdims=True)
                    + jnp.sum(r_n * r_n, axis=1, keepdims=True)
                    + jnp.sum(p_n * p_n, axis=1, keepdims=True)
                    + jnp.sum(n_n * n_n, axis=1, keepdims=True))
    row_loss = kg_row + kg_l2loss_lambda * l2_row                     # (TB, 1)

    # only rows belonging to this (tile, relation) segment contribute;
    # also masks padded tail rows and fully-invalid padding steps.
    row = row_block * tb + lax.broadcasted_iota(jnp.int32, (tb, 1), 0)
    mask = (row >= row_start) & (row < row_end)
    partial = jnp.sum(jnp.where(mask, row_loss, 0.0), axis=0, keepdims=True)
    out_ref[...] = partial.reshape(1, 1, 1)


def _social_loss_kernel(iu_ref, ikg_ref, ps_ref, ns_ref, out_ref,
                        *, social_l2loss_lambda, total_b):
    pid = pl.program_id(0)
    tb = iu_ref.shape[0]

    inv_u = iu_ref[...].astype(jnp.float32)
    inv_s = inv_u + ikg_ref[...].astype(jnp.float32)
    pos_s = ps_ref[...].astype(jnp.float32)
    neg_s = ns_ref[...].astype(jnp.float32)

    pos_score = jnp.sum(inv_s * pos_s, axis=1, keepdims=True)   # (TB, 1)
    neg_score = jnp.sum(inv_s * neg_s, axis=1, keepdims=True)   # (TB, 1)

    # matches torch: -log(1e-10 + sigmoid(pos - neg)), computed stably
    social_row = -jnp.log(1e-10 + _sigmoid(pos_score - neg_score))
    l2_row = 0.5 * (jnp.sum(inv_u * inv_u, axis=1, keepdims=True)
                    + jnp.sum(pos_s * pos_s, axis=1, keepdims=True)
                    + jnp.sum(neg_s * neg_s, axis=1, keepdims=True))
    row_loss = social_row + social_l2loss_lambda * l2_row

    row = pid * tb + lax.broadcasted_iota(jnp.int32, (tb, 1), 0)
    mask = row < total_b
    partial = jnp.sum(jnp.where(mask, row_loss, 0.0), axis=0, keepdims=True)
    out_ref[...] = partial.reshape(1, 1, 1)


def _score_kernel(inv_ref, vot_ref, out_ref):
    # (TM, D) @ (D, TN): no in-kernel transpose, lane-dense output store.
    out_ref[...] = jnp.dot(inv_ref[...], vot_ref[...],
                           preferred_element_type=jnp.float32).astype(out_ref.dtype)


# ----------------------------------------------------------------------------
# tiling / metadata helpers + pallas_call wrappers
# ----------------------------------------------------------------------------
def _round_up(x, m):
    return ((x + m - 1) // m) * m


def _pad_rows(x, target_rows):
    pad = target_rows - x.shape[0]
    if pad <= 0:
        return x
    widths = [(0, pad)] + [(0, 0)] * (x.ndim - 1)
    return jnp.pad(x, widths)


def _pick_batch_tile(batch, per_row_bytes, fixed_bytes=0):
    # biggest batch tile (multiple of 8) whose double-buffered blocks stay
    # within the generation-aware per-block budget.
    avail = max(_BLOCK_BUDGET - 2 * fixed_bytes, 2 * 8 * per_row_bytes)
    tb = avail // max(2 * per_row_bytes, 1)
    tb = max(8, min(_TB_CAP, (tb // 8) * 8))
    b_pad = _round_up(max(batch, 1), 8)
    return b_pad if b_pad <= tb else tb


def _kg_segments(r_sorted, batch, tb, n_row_tiles, n_relations):
    """Per-step metadata (relation id, row block, row_start, row_end) for the
    relation-sorted batch. A segment = maximal run of rows within one row tile
    sharing one relation; each segment becomes one grid step."""
    max_steps = n_row_tiles + max(min(n_relations, batch) - 1, 0)

    rows = jnp.arange(batch, dtype=jnp.int32)
    r_sorted = r_sorted.astype(jnp.int32)
    is_group_start = jnp.concatenate(
        [jnp.ones((1,), dtype=bool), r_sorted[1:] != r_sorted[:-1]])
    is_tile_start = (rows % tb) == 0
    seg_flag = is_group_start | is_tile_start
    seg_idx = jnp.cumsum(seg_flag.astype(jnp.int32)) - 1
    num_segments = seg_idx[-1] + 1

    scatter_idx = jnp.where(seg_flag, seg_idx, max_steps)        # OOB -> dropped
    seg_start = jnp.zeros((max_steps,), jnp.int32).at[scatter_idx].set(
        rows, mode="drop")
    s_range = jnp.arange(max_steps, dtype=jnp.int32)
    valid = s_range < num_segments
    next_start = jnp.concatenate([seg_start[1:],
                                  jnp.asarray([batch], jnp.int32)])
    seg_end = jnp.where(s_range == num_segments - 1, batch, next_start)
    seg_end = jnp.where(valid, seg_end, 0)                       # invalid: empty
    seg_start = jnp.where(valid, seg_start, 0)
    step_group = jnp.where(valid, r_sorted[seg_start], 0)
    step_block = seg_start // tb

    meta = jnp.stack([step_group, step_block, seg_start, seg_end], axis=0)
    return meta.astype(jnp.int32), max_steps


def kg_loss_pallas(r_sorted, h_e, pos_e, neg_e, relation_embed, trans_M,
                   kg_l2loss_lambda):
    """r_sorted: (B,) relation ids (batch already sorted by relation);
    h_e/pos_e/neg_e: (B, D) sorted entity embeddings;
    relation_embed: (n_rel, R); trans_M: (n_rel, D, R)."""
    B, D = h_e.shape
    n_rel, _, R = trans_M.shape

    per_row = 3 * D * h_e.dtype.itemsize
    fixed = (D * R + R) * trans_M.dtype.itemsize
    TB = _pick_batch_tile(B, per_row, fixed)
    B_pad = _round_up(B, TB)
    n_row_tiles = B_pad // TB

    h_p = _pad_rows(h_e, B_pad)
    pos_p = _pad_rows(pos_e, B_pad)
    neg_p = _pad_rows(neg_e, B_pad)
    rel3 = relation_embed.reshape(n_rel, 1, R)

    meta, max_steps = _kg_segments(r_sorted, B, TB, n_row_tiles, n_rel)

    grid_spec = pltpu.PrefetchScalarGridSpec(
        num_scalar_prefetch=1,
        grid=(max_steps,),
        in_specs=[
            pl.BlockSpec((1, 1, R), lambda s, m: (m[0, s], 0, 0)),   # r_embed row
            pl.BlockSpec((TB, D), lambda s, m: (m[1, s], 0)),        # h
            pl.BlockSpec((TB, D), lambda s, m: (m[1, s], 0)),        # pos_t
            pl.BlockSpec((TB, D), lambda s, m: (m[1, s], 0)),        # neg_t
            pl.BlockSpec((1, D, R), lambda s, m: (m[0, s], 0, 0)),   # W_r slice
        ],
        out_specs=pl.BlockSpec((1, 1, 1), lambda s, m: (s, 0, 0)),
    )
    partials = pl.pallas_call(
        functools.partial(_kg_loss_kernel,
                          kg_l2loss_lambda=float(kg_l2loss_lambda)),
        out_shape=jax.ShapeDtypeStruct((max_steps, 1, 1), jnp.float32),
        grid_spec=grid_spec,
        compiler_params=pltpu.CompilerParams(
            dimension_semantics=("parallel",),
            vmem_limit_bytes=_VMEM_LIMIT),
    )(meta, rel3, h_p, pos_p, neg_p, trans_M)
    return jnp.sum(partials) / B


def social_loss_pallas(inviter_embed, inviter_kg_embed,
                       voter_pos_social, voter_neg_social,
                       social_l2loss_lambda):
    B, D = inviter_embed.shape
    per_row = 4 * D * inviter_embed.dtype.itemsize
    TB = _pick_batch_tile(B, per_row)
    B_pad = _round_up(B, TB)
    n_tiles = B_pad // TB

    arrs = [_pad_rows(a, B_pad) for a in
            (inviter_embed, inviter_kg_embed, voter_pos_social, voter_neg_social)]

    partials = pl.pallas_call(
        functools.partial(_social_loss_kernel,
                          social_l2loss_lambda=float(social_l2loss_lambda),
                          total_b=int(B)),
        out_shape=jax.ShapeDtypeStruct((n_tiles, 1, 1), jnp.float32),
        grid=(n_tiles,),
        in_specs=[pl.BlockSpec((TB, D), lambda i: (i, 0))] * 4,
        out_specs=pl.BlockSpec((1, 1, 1), lambda i: (i, 0, 0)),
        compiler_params=pltpu.CompilerParams(
            dimension_semantics=("parallel",),
            vmem_limit_bytes=_VMEM_LIMIT),
    )(*arrs)
    return jnp.sum(partials) / B


def score_pallas(inviter_social, voter_social):
    n_inv, D = inviter_social.shape
    n_vot = voter_social.shape[0]

    TM = min(_TM_CAP, _round_up(max(n_inv, 1), 8))
    TN = min(_TN_CAP, _round_up(max(n_vot, 1), 128))   # lane-dense output tiles
    m_pad = _round_up(n_inv, TM)
    n_pad = _round_up(n_vot, TN)

    inv_p = _pad_rows(inviter_social, m_pad)
    # one-time wrapper transpose -> kernel contracts (TM, D) @ (D, TN)
    vot_t = jnp.pad(voter_social.T, ((0, 0), (0, n_pad - n_vot)))

    itemsize = inviter_social.dtype.itemsize
    cost = pl.CostEstimate(
        flops=2 * m_pad * n_pad * D,
        transcendentals=0,
        bytes_accessed=(m_pad * D + n_pad * D) * itemsize + m_pad * n_pad * 4)

    out = pl.pallas_call(
        _score_kernel,
        out_shape=jax.ShapeDtypeStruct((m_pad, n_pad), jnp.float32),
        grid=(m_pad // TM, n_pad // TN),
        in_specs=[
            pl.BlockSpec((TM, D), lambda i, j: (i, 0)),
            pl.BlockSpec((D, TN), lambda i, j: (0, j)),
        ],
        out_specs=pl.BlockSpec((TM, TN), lambda i, j: (i, j)),
        compiler_params=pltpu.CompilerParams(
            dimension_semantics=("parallel", "parallel"),
            vmem_limit_bytes=_VMEM_LIMIT),
        cost_estimate=cost,
    )(inv_p, vot_t)
    return out[:n_inv, :n_vot]


# ----------------------------------------------------------------------------
# CKE module (JAX) — parameters initialized deterministically (xavier uniform)
# ----------------------------------------------------------------------------
def _xavier_uniform(key, shape):
    if len(shape) == 2:
        fan_out, fan_in = shape[0], shape[1]
    else:
        receptive = 1
        for s in shape[2:]:
            receptive *= s
        fan_in = shape[1] * receptive
        fan_out = shape[0] * receptive
    bound = (6.0 / (fan_in + fan_out)) ** 0.5
    return jax.random.uniform(key, shape, minval=-bound, maxval=bound,
                              dtype=jnp.float32)


class CKE:
    def __init__(self, key, n_users, n_entities, n_relations,
                 embed_dim, relation_dim,
                 social_l2loss_lambda=1e-4, kg_l2loss_lambda=1e-4):
        self.n_users = n_users
        self.n_entities = n_entities
        self.n_relations = n_relations
        self.embed_dim = embed_dim
        self.relation_dim = relation_dim
        self.social_l2loss_lambda = social_l2loss_lambda
        self.kg_l2loss_lambda = kg_l2loss_lambda

        k1, k2, k3, k4 = jax.random.split(key, 4)
        self.user_embed = _xavier_uniform(k1, (n_users, embed_dim))
        self.entity_embed = _xavier_uniform(k2, (n_entities, embed_dim))
        self.relation_embed = _xavier_uniform(k3, (n_relations, relation_dim))
        self.trans_M = _xavier_uniform(k4, (n_relations, embed_dim, relation_dim))

    # ----- training losses (Pallas hot path) -----
    def calc_kg_loss(self, h, r, pos_t, neg_t):
        # sort by relation so each grid step streams ONE (D, R) trans_M slice;
        # the mean loss is permutation invariant.
        order = jnp.argsort(r)
        r_sorted = r[order].astype(jnp.int32)
        h_e = self.entity_embed[h[order]]          # (B, D)
        pos_e = self.entity_embed[pos_t[order]]    # (B, D)
        neg_e = self.entity_embed[neg_t[order]]    # (B, D)
        return kg_loss_pallas(r_sorted, h_e, pos_e, neg_e,
                              self.relation_embed, self.trans_M,
                              self.kg_l2loss_lambda)

    def calc_social_loss(self, inviter_ids, voter_pos_ids, voter_neg_ids):
        inviter_embed = self.user_embed[inviter_ids]
        inviter_kg_embed = self.entity_embed[inviter_ids]
        # wrapper-side adds fuse into the XLA gathers: 6 -> 4 kernel streams
        voter_pos_social = (self.user_embed[voter_pos_ids]
                            + self.entity_embed[voter_pos_ids])
        voter_neg_social = (self.user_embed[voter_neg_ids]
                            + self.entity_embed[voter_neg_ids])
        return social_loss_pallas(inviter_embed, inviter_kg_embed,
                                  voter_pos_social, voter_neg_social,
                                  self.social_l2loss_lambda)

    def calc_loss(self, inviter_ids, voter_pos_ids, voter_neg_ids, h, r, pos_t, neg_t):
        kg_loss = self.calc_kg_loss(h, r, pos_t, neg_t)
        social_loss = self.calc_social_loss(inviter_ids, voter_pos_ids, voter_neg_ids)
        return kg_loss + social_loss

    # ----- inference score (Pallas tiled matmul) -----
    def calc_score(self, inviter_ids, voter_ids):
        inviter_social = self.user_embed[inviter_ids] + self.entity_embed[inviter_ids]
        voter_social = self.user_embed[voter_ids] + self.entity_embed[voter_ids]
        return score_pallas(inviter_social, voter_social)

    def forward(self, *inputs, is_train):
        if is_train:
            return self.calc_loss(*inputs)
        else:
            return self.calc_score(*inputs)

    __call__ = forward


# ----------------------------------------------------------------------------
# main
# ----------------------------------------------------------------------------
if __name__ == "__main__":
    key = jax.random.PRNGKey(0)
    k_params, k_ids = jax.random.split(key)

    n_users = 16
    n_entities = 20
    n_relations = 5
    embed_dim = 32
    relation_dim = 32
    kg_batch = 8
    social_batch = 8

    model = CKE(k_params, n_users, n_entities, n_relations,
                embed_dim, relation_dim,
                social_l2loss_lambda=1e-4, kg_l2loss_lambda=1e-4)

    k1, k2, k3, k4, k5, k6, k7 = jax.random.split(k_ids, 7)
    # social ids must be valid for BOTH user_embed and entity_embed tables
    inviter_ids = jax.random.randint(k1, (social_batch,), 0, n_users)
    voter_pos_ids = jax.random.randint(k2, (social_batch,), 0, n_users)
    voter_neg_ids = jax.random.randint(k3, (social_batch,), 0, n_users)
    h = jax.random.randint(k4, (kg_batch,), 0, n_entities)
    r = jax.random.randint(k5, (kg_batch,), 0, n_relations)
    pos_t = jax.random.randint(k6, (kg_batch,), 0, n_entities)
    neg_t = jax.random.randint(k7, (kg_batch,), 0, n_entities)

    # training path: combined KG + social loss (scalar)
    loss = model(inviter_ids, voter_pos_ids, voter_neg_ids, h, r, pos_t, neg_t,
                 is_train=True)
    loss = jax.block_until_ready(loss)

    # inference path: inviter x voter social score matrix
    score = model(inviter_ids, voter_pos_ids, is_train=False)
    score = jax.block_until_ready(score)

    assert score.shape == (social_batch, social_batch)
    assert jnp.isfinite(loss)
    assert bool(jnp.all(jnp.isfinite(score)))

    print("KERNEL_OK")
</pallas_src>

<mosaic_0001>
module attributes {stable_mosaic.version = 11 : i64} {
  func.func @_kg_loss_kernel(%arg0: i32, %arg1: memref<4x5xi32, #tpu.memory_space<smem>>, %arg2: memref<1x1x32xf32, #tpu.memory_space<vmem>>, %arg3: memref<8x32xf32, #tpu.memory_space<vmem>>, %arg4: memref<8x32xf32, #tpu.memory_space<vmem>>, %arg5: memref<8x32xf32, #tpu.memory_space<vmem>>, %arg6: memref<1x32x32xf32, #tpu.memory_space<vmem>>, %arg7: memref<1x1x1xf32, #tpu.memory_space<vmem>>) attributes {dimension_semantics = [#tpu.dimension_semantics<parallel>], iteration_bounds = array<i64: 5>, scalar_prefetch = 1 : i64, scratch_operands = 0 : i64, tpu.core_type = #tpu.core_type<tc>, window_params = [{transform_indices = @transform_0, window_bounds = array<i64: 1, 1, 32>}, {transform_indices = @transform_1, window_bounds = array<i64: 8, 32>}, {transform_indices = @transform_2, window_bounds = array<i64: 8, 32>}, {transform_indices = @transform_3, window_bounds = array<i64: 8, 32>}, {transform_indices = @transform_4, window_bounds = array<i64: 1, 32, 32>}, {transform_indices = @transform_5, window_bounds = array<i64: 1, 1, 1>}]} {
    %c1 = arith.constant 1 : index
    %0 = arith.index_cast %arg0 : i32 to index
    %1 = memref.load %arg1[%c1, %0] : memref<4x5xi32, #tpu.memory_space<smem>>
    %c2 = arith.constant 2 : index
    %2 = arith.index_cast %arg0 : i32 to index
    %3 = memref.load %arg1[%c2, %2] : memref<4x5xi32, #tpu.memory_space<smem>>
    %c3 = arith.constant 3 : index
    %4 = arith.index_cast %arg0 : i32 to index
    %5 = memref.load %arg1[%c3, %4] : memref<4x5xi32, #tpu.memory_space<smem>>
    %c0 = arith.constant 0 : index
    %c0_0 = arith.constant 0 : index
    %c0_1 = arith.constant 0 : index
    %6 = vector.load %arg6[%c0, %c0_0, %c0_1] : memref<1x32x32xf32, #tpu.memory_space<vmem>>, vector<1x32x32xf32>
    %7 = vector.shape_cast %6 : vector<1x32x32xf32> to vector<32x32xf32>
    %c0_2 = arith.constant 0 : index
    %c0_3 = arith.constant 0 : index
    %8 = vector.load %arg3[%c0_2, %c0_3] : memref<8x32xf32, #tpu.memory_space<vmem>>, vector<8x32xf32>
    %cst = arith.constant dense<0.000000e+00> : vector<8x32xf32>
    %9 = tpu.matmul %8, %7, %cst {dimension_numbers = #tpu.dot_dimension_numbers<[1], [0], [0], [1], [0, 0, 1, 1], [], []>} : vector<8x32xf32>, vector<32x32xf32>, vector<8x32xf32> -> vector<8x32xf32>
    %c0_4 = arith.constant 0 : index
    %c0_5 = arith.constant 0 : index
    %10 = vector.load %arg4[%c0_4, %c0_5] : memref<8x32xf32, #tpu.memory_space<vmem>>, vector<8x32xf32>
    %cst_6 = arith.constant dense<0.000000e+00> : vector<8x32xf32>
    %11 = tpu.matmul %10, %7, %cst_6 {dimension_numbers = #tpu.dot_dimension_numbers<[1], [0], [0], [1], [0, 0, 1, 1], [], []>} : vector<8x32xf32>, vector<32x32xf32>, vector<8x32xf32> -> vector<8x32xf32>
    %c0_7 = arith.constant 0 : index
    %c0_8 = arith.constant 0 : index
    %12 = vector.load %arg5[%c0_7, %c0_8] : memref<8x32xf32, #tpu.memory_space<vmem>>, vector<8x32xf32>
    %cst_9 = arith.constant dense<0.000000e+00> : vector<8x32xf32>
    %13 = tpu.matmul %12, %7, %cst_9 {dimension_numbers = #tpu.dot_dimension_numbers<[1], [0], [0], [1], [0, 0, 1, 1], [], []>} : vector<8x32xf32>, vector<32x32xf32>, vector<8x32xf32> -> vector<8x32xf32>
    %c0_10 = arith.constant 0 : index
    %c0_11 = arith.constant 0 : index
    %c0_12 = arith.constant 0 : index
    %14 = vector.load %arg2[%c0_10, %c0_11, %c0_12] : memref<1x1x32xf32, #tpu.memory_space<vmem>>, vector<1x1x32xf32>
    %15 = vector.shape_cast %14 : vector<1x1x32xf32> to vector<1x32xf32>
    %16 = arith.mulf %15, %15 : vector<1x32xf32>
    %cst_13 = arith.constant dense<0.000000e+00> : vector<1xf32>
    %17 = vector.multi_reduction <add>, %16, %cst_13 [1] : vector<1x32xf32> to vector<1xf32>
    %18 = vector.shape_cast %17 : vector<1xf32> to vector<1x1xf32>
    %cst_14 = arith.constant 1.000000e-24 : f32
    %19 = vector.broadcast %cst_14 : f32 to vector<1x1xf32>
    %20 = arith.maximumf %18, %19 : vector<1x1xf32>
    %21 = math.rsqrt %20 : vector<1x1xf32>
    %22 = vector.broadcast %21 : vector<1x1xf32> to vector<1x32xf32>
    %23 = arith.mulf %15, %22 : vector<1x32xf32>
    %24 = arith.mulf %9, %9 : vector<8x32xf32>
    %cst_15 = arith.constant dense<0.000000e+00> : vector<8xf32>
    %25 = vector.multi_reduction <add>, %24, %cst_15 [1] : vector<8x32xf32> to vector<8xf32>
    %26 = vector.shape_cast %25 : vector<8xf32> to vector<8x1xf32>
    %cst_16 = arith.constant 1.000000e-24 : f32
    %27 = vector.broadcast %cst_16 : f32 to vector<8x1xf32>
    %28 = arith.maximumf %26, %27 : vector<8x1xf32>
    %29 = math.rsqrt %28 : vector<8x1xf32>
    %30 = vector.broadcast %29 : vector<8x1xf32> to vector<8x32xf32>
    %31 = arith.mulf %9, %30 : vector<8x32xf32>
    %32 = arith.mulf %11, %11 : vector<8x32xf32>
    %cst_17 = arith.constant dense<0.000000e+00> : vector<8xf32>
    %33 = vector.multi_reduction <add>, %32, %cst_17 [1] : vector<8x32xf32> to vector<8xf32>
    %34 = vector.shape_cast %33 : vector<8xf32> to vector<8x1xf32>
    %cst_18 = arith.constant 1.000000e-24 : f32
    %35 = vector.broadcast %cst_18 : f32 to vector<8x1xf32>
    %36 = arith.maximumf %34, %35 : vector<8x1xf32>
    %37 = math.rsqrt %36 : vector<8x1xf32>
    %38 = vector.broadcast %37 : vector<8x1xf32> to vector<8x32xf32>
    %39 = arith.mulf %11, %38 : vector<8x32xf32>
    %40 = arith.mulf %13, %13 : vector<8x32xf32>
    %cst_19 = arith.constant dense<0.000000e+00> : vector<8xf32>
    %41 = vector.multi_reduction <add>, %40, %cst_19 [1] : vector<8x32xf32> to vector<8xf32>
    %42 = vector.shape_cast %41 : vector<8xf32> to vector<8x1xf32>
    %cst_20 = arith.constant 1.000000e-24 : f32
    %43 = vector.broadcast %cst_20 : f32 to vector<8x1xf32>
    %44 = arith.maximumf %42, %43 : vector<8x1xf32>
    %45 = math.rsqrt %44 : vector<8x1xf32>
    %46 = vector.broadcast %45 : vector<8x1xf32> to vector<8x32xf32>
    %47 = arith.mulf %13, %46 : vector<8x32xf32>
    %48 = vector.broadcast %23 : vector<1x32xf32> to vector<8x32xf32>
    %49 = arith.addf %31, %48 : vector<8x32xf32>
    %50 = arith.subf %49, %39 : vector<8x32xf32>
    %51 = vector.broadcast %23 : vector<1x32xf32> to vector<8x32xf32>
    %52 = arith.addf %31, %51 : vector<8x32xf32>
    %53 = arith.subf %52, %47 : vector<8x32xf32>
    %54 = arith.mulf %50, %50 : vector<8x32xf32>
    %cst_21 = arith.constant dense<0.000000e+00> : vector<8xf32>
    %55 = vector.multi_reduction <add>, %54, %cst_21 [1] : vector<8x32xf32> to vector<8xf32>
    %56 = vector.shape_cast %55 : vector<8xf32> to vector<8x1xf32>
    %57 = arith.mulf %53, %53 : vector<8x32xf32>
    %cst_22 = arith.constant dense<0.000000e+00> : vector<8xf32>
    %58 = vector.multi_reduction <add>, %57, %cst_22 [1] : vector<8x32xf32> to vector<8xf32>
    %59 = vector.shape_cast %58 : vector<8xf32> to vector<8x1xf32>
    %60 = arith.subf %59, %56 : vector<8x1xf32>
    %cst_23 = arith.constant 0.000000e+00 : f32
    %61 = vector.broadcast %cst_23 : f32 to vector<8x1xf32>
    %62 = arith.minimumf %60, %61 : vector<8x1xf32>
    %63 = math.absf %60 : vector<8x1xf32>
    %cst_24 = arith.constant 0.000000e+00 : f32
    %64 = vector.broadcast %cst_24 : f32 to vector<8x1xf32>
    %65 = arith.subf %64, %63 : vector<8x1xf32>
    %66 = math.exp %65 : vector<8x1xf32>
    %67 = math.log1p %66 : vector<8x1xf32>
    %68 = arith.subf %62, %67 : vector<8x1xf32>
    %cst_25 = arith.constant 0.000000e+00 : f32
    %69 = vector.broadcast %cst_25 : f32 to vector<8x1xf32>
    %70 = arith.subf %69, %68 : vector<8x1xf32>
    %71 = arith.mulf %31, %31 : vector<8x32xf32>
    %cst_26 = arith.constant dense<0.000000e+00> : vector<8xf32>
    %72 = vector.multi_reduction <add>, %71, %cst_26 [1] : vector<8x32xf32> to vector<8xf32>
    %73 = vector.shape_cast %72 : vector<8xf32> to vector<8x1xf32>
    %74 = arith.mulf %23, %23 : vector<1x32xf32>
    %cst_27 = arith.constant dense<0.000000e+00> : vector<1xf32>
    %75 = vector.multi_reduction <add>, %74, %cst_27 [1] : vector<1x32xf32> to vector<1xf32>
    %76 = vector.shape_cast %75 : vector<1xf32> to vector<1x1xf32>
    %77 = vector.broadcast %76 : vector<1x1xf32> to vector<8x1xf32>
    %78 = arith.addf %73, %77 : vector<8x1xf32>
    %79 = arith.mulf %39, %39 : vector<8x32xf32>
    %cst_28 = arith.constant dense<0.000000e+00> : vector<8xf32>
    %80 = vector.multi_reduction <add>, %79, %cst_28 [1] : vector<8x32xf32> to vector<8xf32>
    %81 = vector.shape_cast %80 : vector<8xf32> to vector<8x1xf32>
    %82 = arith.addf %78, %81 : vector<8x1xf32>
    %83 = arith.mulf %47, %47 : vector<8x32xf32>
    %cst_29 = arith.constant dense<0.000000e+00> : vector<8xf32>
    %84 = vector.multi_reduction <add>, %83, %cst_29 [1] : vector<8x32xf32> to vector<8xf32>
    %85 = vector.shape_cast %84 : vector<8xf32> to vector<8x1xf32>
    %86 = arith.addf %82, %85 : vector<8x1xf32>
    %cst_30 = arith.constant 5.000000e-01 : f32
    %87 = vector.broadcast %cst_30 : f32 to vector<8x1xf32>
    %88 = arith.mulf %87, %86 : vector<8x1xf32>
    %cst_31 = arith.constant 9.99999974E-5 : f32
    %89 = vector.broadcast %cst_31 : f32 to vector<8x1xf32>
    %90 = arith.mulf %89, %88 : vector<8x1xf32>
    %91 = arith.addf %70, %90 : vector<8x1xf32>
    %c8_i32 = arith.constant 8 : i32
    %92 = arith.muli %1, %c8_i32 : i32
    %93 = tpu.iota {dimensions = array<i32: 0>} : vector<8x1xi32>
    %94 = vector.broadcast %92 : i32 to vector<8x1xi32>
    %95 = arith.addi %94, %93 : vector<8x1xi32>
    %96 = vector.broadcast %3 : i32 to vector<8x1xi32>
    %97 = arith.cmpi sge, %95, %96 : vector<8x1xi32>
    %98 = vector.broadcast %5 : i32 to vector<8x1xi32>
    %99 = arith.cmpi slt, %95, %98 : vector<8x1xi32>
    %100 = arith.andi %97, %99 : vector<8x1xi1>
    %cst_32 = arith.constant 0.000000e+00 : f32
    %101 = vector.broadcast %cst_32 : f32 to vector<8x1xf32>
    %102 = arith.select %100, %91, %101 : vector<8x1xi1>, vector<8x1xf32>
    %cst_33 = arith.constant dense<0.000000e+00> : vector<1xf32>
    %103 = vector.multi_reduction <add>, %102, %cst_33 [0] : vector<8x1xf32> to vector<1xf32>
    %104 = vector.shape_cast %103 : vector<1xf32> to vector<1x1xf32>
    %105 = vector.shape_cast %104 : vector<1x1xf32> to vector<1x1x1xf32>
    %c0_34 = arith.constant 0 : index
    %c0_35 = arith.constant 0 : index
    %c0_36 = arith.constant 0 : index
    %106 = vector.load %arg7[%c0_34, %c0_35, %c0_36] : memref<1x1x1xf32, #tpu.memory_space<vmem>>, vector<1x1x1xf32>
    tpu.vector_store %arg7[%c0_34, %c0_35, %c0_36], %105 {strides = array<i32>} : memref<1x1x1xf32, #tpu.memory_space<vmem>>, vector<1x1x1xf32>,
    return
  }
  func.func @transform_0(%arg0: i32, %arg1: memref<4x5xi32, #tpu.memory_space<smem>>) -> (i32, i32, i32) {
    %c0 = arith.constant 0 : index
    %0 = arith.index_cast %arg0 : i32 to index
    %1 = memref.load %arg1[%c0, %0] : memref<4x5xi32, #tpu.memory_space<smem>>
    %c0_i32 = arith.constant 0 : i32
    %c0_i32_0 = arith.constant 0 : i32
    %c0_i32_1 = arith.constant 0 : i32
    return %1, %c0_i32, %c0_i32_0 : i32, i32, i32
  }
  func.func @transform_1(%arg0: i32, %arg1: memref<4x5xi32, #tpu.memory_space<smem>>) -> (i32, i32) {
    %c1 = arith.constant 1 : index
    %0 = arith.index_cast %arg0 : i32 to index
    %1 = memref.load %arg1[%c1, %0] : memref<4x5xi32, #tpu.memory_space<smem>>
    %c0_i32 = arith.constant 0 : i32
    %c0_i32_0 = arith.constant 0 : i32
    return %1, %c0_i32 : i32, i32
  }
  func.func @transform_2(%arg0: i32, %arg1: memref<4x5xi32, #tpu.memory_space<smem>>) -> (i32, i32) {
    %c1 = arith.constant 1 : index
    %0 = arith.index_cast %arg0 : i32 to index
    %1 = memref.load %arg1[%c1, %0] : memref<4x5xi32, #tpu.memory_space<smem>>
    %c0_i32 = arith.constant 0 : i32
    %c0_i32_0 = arith.constant 0 : i32
    return %1, %c0_i32 : i32, i32
  }
  func.func @transform_3(%arg0: i32, %arg1: memref<4x5xi32, #tpu.memory_space<smem>>) -> (i32, i32) {
    %c1 = arith.constant 1 : index
    %0 = arith.index_cast %arg0 : i32 to index
    %1 = memref.load %arg1[%c1, %0] : memref<4x5xi32, #tpu.memory_space<smem>>
    %c0_i32 = arith.constant 0 : i32
    %c0_i32_0 = arith.constant 0 : i32
    return %1, %c0_i32 : i32, i32
  }
  func.func @transform_4(%arg0: i32, %arg1: memref<4x5xi32, #tpu.memory_space<smem>>) -> (i32, i32, i32) {
    %c0 = arith.constant 0 : index
    %0 = arith.index_cast %arg0 : i32 to index
    %1 = memref.load %arg1[%c0, %0] : memref<4x5xi32, #tpu.memory_space<smem>>
    %c0_i32 = arith.constant 0 : i32
    %c0_i32_0 = arith.constant 0 : i32
    %c0_i32_1 = arith.constant 0 : i32
    return %1, %c0_i32, %c0_i32_0 : i32, i32, i32
  }
  func.func @transform_5(%arg0: i32, %arg1: memref<4x5xi32, #tpu.memory_space<smem>>) -> (i32, i32, i32) {
    %c0_i32 = arith.constant 0 : i32
    %c0_i32_0 = arith.constant 0 : i32
    %c0_i32_1 = arith.constant 0 : i32
    return %arg0, %c0_i32, %c0_i32_0 : i32, i32, i32
  }
}

</mosaic_0001>

<llo_original>
// kernel: tpu_custom_call.1
$region0: #{tpu_custom_call.1}
  #allocation0 [shape = 'u32[]', space=smem, size = 0x4, offset = 0x4, fixed_abs, tag = 'smem constant byte address 0x4 - core index']
  #allocation1 [shape = 'u32[144,128]{1,0:T(1,128)}', space=vmem, size = 0x12000, scoped, tag = 'internal scratch']
  #allocation2 [shape = 's32[1]{0}', space=sflag, size = 0x4, scoped, tag = 'scoped memory for tpu_custom_call.1']
  #allocation3 [shape = 'u8[2048]{0}', space=smem, size = 0x800, scoped, tag = 'prefetched SMEM operand 0']
  %s0 = inlined_call_operand.hbm [shape: s32[4,5], index: 0, kind: input, shape index: {}]
  %s1 = inlined_call_operand.hbm [shape: f32[5,1,32], index: 1, kind: input, shape index: {}]
  %s2 = inlined_call_operand.hbm [shape: f32[8,32], index: 2, kind: input, shape index: {}]
  %s3 = inlined_call_operand.vmem [shape: f32[8,32], index: 3, kind: input, shape index: {}]
  %s4 = inlined_call_operand.hbm [shape: f32[8,32], index: 4, kind: input, shape index: {}]
  %s5 = inlined_call_operand.hbm [shape: f32[5,32,32], index: 5, kind: input, shape index: {}]
  %s6 = inlined_call_operand.vmem [shape: f32[5,1,1], index: 6, kind: output, shape index: {}]
  %s7 = sld [smem:[#allocation0]]
  $region69: #{tpu_custom_call.1} parent=0
    _
  %s9 = ssub.s32 1, %s7
  %s10 = scalar_select 0, %s9, %s7
  %12 = dma.hbm_to_smem %s0, 64, [#allocation3], [#allocation2]
  %13 = dma.done [#allocation2], 64
  %14 = sfence
  $region1: #{tpu_custom_call.1} parent=0
    #allocation4 [shape = 'u8[1024]{0}', space=vmem, size = 0x400, scoped, tag = 'input window, operand 1']
    #allocation5 [shape = 's32[2]{0}', space=sflag, size = 0x8, scoped, tag = 'scoped memory for tpu_custom_call.1']
    #allocation6 [shape = 'u8[8192]{0}', space=vmem, size = 0x2000, scoped, tag = 'input window, operand 2']
    #allocation7 [shape = 's32[2]{0}', space=sflag, size = 0x8, scoped, tag = 'scoped memory for tpu_custom_call.1']
    #allocation8 [shape = 'u8[8192]{0}', space=vmem, size = 0x2000, scoped, tag = 'input window, operand 4']
    #allocation9 [shape = 'u8[32768]{0}', space=vmem, size = 0x8000, scoped, tag = 'input window, operand 5']
    #allocation10 [shape = 's32[2]{0}', space=sflag, size = 0x8, scoped, tag = 'scoped memory for tpu_custom_call.1']
    %15 = vsyncpa [#allocation5], 0
    %s16 = scalar_lea.sflag [#allocation5], 1
    %17 = vsyncpa %s16, 0
    %18 = vsyncpa [#allocation7], 0
    %s19 = scalar_lea.sflag [#allocation7], 1
    %20 = vsyncpa %s19, 0
    %21 = vsyncpa [#allocation10], 0
    %s22 = scalar_lea.sflag [#allocation10], 1
    %23 = vsyncpa %s22, 0
    loop: start=0, step=1, limit=7
    $region2: #{tpu_custom_call.1} parent=1 // loop_pre_header
      _
    $region3: #{tpu_custom_call.1} parent=1 // loop_header
      %s25 = sphi 0, %s29
      %p26 = scmp.ge.s32.totalorder %s25, 7
      %s37 = sphi 0, %s39
      %s40 = sphi 0, %s37
      %s41 = sphi 0, %s40
      %s57 = sphi 0, %s41
      %s79 = sphi 0, %s81
      %s82 = sphi 0, %s79
      %s83 = sphi 0, %s82
      %s99 = sphi 0, %s83
      %s121 = sphi 0, %s123
      %s124 = sphi 0, %s121
      %s125 = sphi 0, %s124
      %s141 = sphi 0, %s125
      %s163 = sphi 0, %s165
      %s166 = sphi 0, %s163
      %s167 = sphi 0, %s166
      %s183 = sphi 0, %s167
      %s191 = sphi 0, %s193
      %s194 = sphi 0, %s191
      %s195 = sphi 0, %s194
      %s211 = sphi 0, %s195
      %s217 = sphi 0, %s219
      %s220 = sphi 0, %s217
      %s221 = sphi 0, %s220
      %s237 = sphi 0, %s221
    $region4: #{tpu_custom_call.1} parent=1 // loop_header_branch
      %28 = sbr.rel (%p26) target = $region8
    $region5: #{tpu_custom_call.1} parent=1 // loop_body
      %s30 = ssub.s32 %s25, 1
      %s31 = ssub.s32 %s25, 2
      %s32 = sadd.s32 %s25, 1
      %s33 = sld [smem:[#allocation3 + %s25]]
      %s34 = sld [smem:[#allocation3 + %s32]]
      %s35 = ssub.s32 %s33, %s34
      %p36 = scmp.eq.s32.totalorder %s35, 0
      %s38 = sadd.s32 %s37, 1
      %s39 = scalar_select %p36, %s37, %s38
      %p42 = pneg %p36
      %p43 = scmp.eq.s32.totalorder %s25, 4
      %p44 = por %p42, %p43
      %p45 = scmp.ne.s32.totalorder %s37, %s40
      %p46 = scmp.eq.s32.totalorder %s25, 0
      %p47 = por %p45, %p46
      %p48 = scmp.ne.s32.totalorder %s37, %s40
      %p49 = scmp.eq.s32.totalorder %s30, 4
      %p50 = por %p48, %p49
      %p51 = scmp.ne.s32.totalorder %s40, %s41
      %p52 = scmp.eq.s32.totalorder %s30, 0
      %p53 = por %p51, %p52
      %p54 = scmp.ne.s32.totalorder %s40, %s41
      %p55 = scmp.eq.s32.totalorder %s31, 4
      %p56 = por %p54, %p55
      %p58 = scmp.ne.s32.totalorder %s41, %s57
      %p59 = scmp.eq.s32.totalorder %s31, 0
      %p60 = por %p58, %p59
      %s61 = sshra.s32 %s25, 7
      %s62 = sand.u32 %s25, 127
      %s63 = sadd.s32 %s61, 1
      %s64 = smul.u32 %s63, 128
      %s65 = sshra.s32 %s25, 7
      %s66 = sand.u32 %s25, 127
      %s67 = sadd.s32 %s64, %s66
      %s68 = sld [smem:[#allocation3 + %s67]]
      %s69 = sshra.s32 %s32, 7
      %s70 = sand.u32 %s32, 127
      %s71 = sadd.s32 %s69, 1
      %s72 = smul.u32 %s71, 128
      %s73 = sshra.s32 %s32, 7
      %s74 = sand.u32 %s32, 127
      %s75 = sadd.s32 %s72, %s74
      %s76 = sld [smem:[#allocation3 + %s75]]
      %s77 = ssub.s32 %s68, %s76
      %p78 = scmp.eq.s32.totalorder %s77, 0
      %s80 = sadd.s32 %s79, 1
      %s81 = scalar_select %p78, %s79, %s80
      %p84 = pneg %p78
      %p85 = scmp.eq.s32.totalorder %s25, 4
      %p86 = por %p84, %p85
      %p87 = scmp.ne.s32.totalorder %s79, %s82
      %p88 = scmp.eq.s32.totalorder %s25, 0
      %p89 = por %p87, %p88
      %p90 = scmp.ne.s32.totalorder %s79, %s82
      %p91 = scmp.eq.s32.totalorder %s30, 4
      %p92 = por %p90, %p91
      %p93 = scmp.ne.s32.totalorder %s82, %s83
      %p94 = scmp.eq.s32.totalorder %s30, 0
      %p95 = por %p93, %p94
      %p96 = scmp.ne.s32.totalorder %s82, %s83
      %p97 = scmp.eq.s32.totalorder %s31, 4
      %p98 = por %p96, %p97
      %p100 = scmp.ne.s32.totalorder %s83, %s99
      %p101 = scmp.eq.s32.totalorder %s31, 0
      %p102 = por %p100, %p101
      %s103 = sshra.s32 %s25, 7
      %s104 = sand.u32 %s25, 127
      %s105 = sadd.s32 %s103, 1
      %s106 = smul.u32 %s105, 128
      %s107 = sshra.s32 %s25, 7
      %s108 = sand.u32 %s25, 127
      %s109 = sadd.s32 %s106, %s108
      %s110 = sld [smem:[#allocation3 + %s109]]
      %s111 = sshra.s32 %s32, 7
      %s112 = sand.u32 %s32, 127
      %s113 = sadd.s32 %s111, 1
      %s114 = smul.u32 %s113, 128
      %s115 = sshra.s32 %s32, 7
      %s116 = sand.u32 %s32, 127
      %s117 = sadd.s32 %s114, %s116
      %s118 = sld [smem:[#allocation3 + %s117]]
      %s119 = ssub.s32 %s110, %s118
      %p120 = scmp.eq.s32.totalorder %s119, 0
      %s122 = sadd.s32 %s121, 1
      %s123 = scalar_select %p120, %s121, %s122
      %p126 = pneg %p120
      %p127 = scmp.eq.s32.totalorder %s25, 4
      %p128 = por %p126, %p127
      %p129 = scmp.ne.s32.totalorder %s121, %s124
      %p130 = scmp.eq.s32.totalorder %s25, 0
      %p131 = por %p129, %p130
      %p132 = scmp.ne.s32.totalorder %s121, %s124
      %p133 = scmp.eq.s32.totalorder %s30, 4
      %p134 = por %p132, %p133
      %p135 = scmp.ne.s32.totalorder %s124, %s125
      %p136 = scmp.eq.s32.totalorder %s30, 0
      %p137 = por %p135, %p136
      %p138 = scmp.ne.s32.totalorder %s124, %s125
      %p139 = scmp.eq.s32.totalorder %s31, 4
      %p140 = por %p138, %p139
      %p142 = scmp.ne.s32.totalorder %s125, %s141
      %p143 = scmp.eq.s32.totalorder %s31, 0
      %p144 = por %p142, %p143
      %s145 = sshra.s32 %s25, 7
      %s146 = sand.u32 %s25, 127
      %s147 = sadd.s32 %s145, 1
      %s148 = smul.u32 %s147, 128
      %s149 = sshra.s32 %s25, 7
      %s150 = sand.u32 %s25, 127
      %s151 = sadd.s32 %s148, %s150
      %s152 = sld [smem:[#allocation3 + %s151]]
      %s153 = sshra.s32 %s32, 7
      %s154 = sand.u32 %s32, 127
      %s155 = sadd.s32 %s153, 1
      %s156 = smul.u32 %s155, 128
      %s157 = sshra.s32 %s32, 7
      %s158 = sand.u32 %s32, 127
      %s159 = sadd.s32 %s156, %s158
      %s160 = sld [smem:[#allocation3 + %s159]]
      %s161 = ssub.s32 %s152, %s160
      %p162 = scmp.eq.s32.totalorder %s161, 0
      %s164 = sadd.s32 %s163, 1
      %s165 = scalar_select %p162, %s163, %s164
      %p168 = pneg %p162
      %p169 = scmp.eq.s32.totalorder %s25, 4
      %p170 = por %p168, %p169
      %p171 = scmp.ne.s32.totalorder %s163, %s166
      %p172 = scmp.eq.s32.totalorder %s25, 0
      %p173 = por %p171, %p172
      %p174 = scmp.ne.s32.totalorder %s163, %s166
      %p175 = scmp.eq.s32.totalorder %s30, 4
      %p176 = por %p174, %p175
      %p177 = scmp.ne.s32.totalorder %s166, %s167
      %p178 = scmp.eq.s32.totalorder %s30, 0
      %p179 = por %p177, %p178
      %p180 = scmp.ne.s32.totalorder %s166, %s167
      %p181 = scmp.eq.s32.totalorder %s31, 4
      %p182 = por %p180, %p181
      %p184 = scmp.ne.s32.totalorder %s167, %s183
      %p185 = scmp.eq.s32.totalorder %s31, 0
      %p186 = por %p184, %p185
      %s187 = sld [smem:[#allocation3 + %s25]]
      %s188 = sld [smem:[#allocation3 + %s32]]
      %s189 = ssub.s32 %s187, %s188
      %p190 = scmp.eq.s32.totalorder %s189, 0
      %s192 = sadd.s32 %s191, 1
      %s193 = scalar_select %p190, %s191, %s192
      %p196 = pneg %p190
      %p197 = scmp.eq.s32.totalorder %s25, 4
      %p198 = por %p196, %p197
      %p199 = scmp.ne.s32.totalorder %s191, %s194
      %p200 = scmp.eq.s32.totalorder %s25, 0
      %p201 = por %p199, %p200
      %p202 = scmp.ne.s32.totalorder %s191, %s194
      %p203 = scmp.eq.s32.totalorder %s30, 4
      %p204 = por %p202, %p203
      %p205 = scmp.ne.s32.totalorder %s194, %s195
      %p206 = scmp.eq.s32.totalorder %s30, 0
      %p207 = por %p205, %p206
      %p208 = scmp.ne.s32.totalorder %s194, %s195
      %p209 = scmp.eq.s32.totalorder %s31, 4
      %p210 = por %p208, %p209
      %p212 = scmp.ne.s32.totalorder %s195, %s211
      %p213 = scmp.eq.s32.totalorder %s31, 0
      %p214 = por %p212, %p213
      %s215 = ssub.s32 %s25, %s32
      %p216 = scmp.eq.s32.totalorder %s215, 0
      %s218 = sadd.s32 %s217, 1
      %s219 = scalar_select %p216, %s217, %s218
      %p222 = pneg %p216
      %p223 = scmp.eq.s32.totalorder %s25, 4
      %p224 = por %p222, %p223
      %p225 = scmp.ne.s32.totalorder %s217, %s220
      %p226 = scmp.eq.s32.totalorder %s25, 0
      %p227 = por %p225, %p226
      %p228 = scmp.ne.s32.totalorder %s217, %s220
      %p229 = scmp.eq.s32.totalorder %s30, 4
      %p230 = por %p228, %p229
      %p231 = scmp.ne.s32.totalorder %s220, %s221
      %p232 = scmp.eq.s32.totalorder %s30, 0
      %p233 = por %p231, %p232
      %p234 = scmp.ne.s32.totalorder %s220, %s221
      %p235 = scmp.eq.s32.totalorder %s31, 4
      %p236 = por %p234, %p235
      %p238 = scmp.ne.s32.totalorder %s221, %s237
      %p239 = scmp.eq.s32.totalorder %s31, 0
      %p240 = por %p238, %p239
      %p241 = scmp.le.s32.totalorder 1, %s25
      %p242 = scmp.lt.s32.totalorder %s25, 6
      %p243 = pnand %p241, %p242
      %p244 = pneg %p243
      // Predicated region
      $region9: #{tpu_custom_call.1} parent=5 // pred_check
        _
      $region10: #{tpu_custom_call.1} parent=5 // pred_check_branch
        %246 = sbr.rel (%p243) target = $region12
      $region11: #{tpu_custom_call.1} parent=5 // pred_region
        %s247 = ssub.s32 %s25, 1
      $region12: #{tpu_custom_call.1} parent=5 // pred_fallthru
        _
      %p248 = scmp.lt.s32.totalorder %s25, 5
      // Predicated region
      $region13: #{tpu_custom_call.1} parent=5 // pred_check
        %p249 = pneg %p248
      $region14: #{tpu_custom_call.1} parent=5 // pred_check_branch
        %251 = sbr.rel (%p249) target = $region16
      $region15: #{tpu_custom_call.1} parent=5 // pred_region
        // Predicated region
        $region17: #{tpu_custom_call.1} parent=15 // pred_check
          %p252 = pneg %p47
        $region18: #{tpu_custom_call.1} parent=15 // pred_check_branch
          %254 = sbr.rel (%p252) target = $region20
        $region19: #{tpu_custom_call.1} parent=15 // pred_region
          %s255 = sand.u32 %s37, 1
          %s256 = scalar_lea.sflag [#allocation5], %s255
          %s257 = sand.u32 %s37, 1
          %s258 = scalar_lea.vmem [#allocation4], %s257
          %s259 = sld [smem:[#allocation3 + %s25]]
          %s261 = ssub.s32 16, 16
          %262 = vsyncadd %s256, %s261
          %s263 = smul.addr %s259, 16
          %s264 = scalar_lea.hbm %s1, %s263
          %s266 = sshll.u32 %s258, 4
          %s267 = int_to_ptr.vmem [resolvable:$true] %s266
          %269 = dma.hbm_to_vmem [thread:$0]  %s264, 16, %s267, %s256
        $region20: #{tpu_custom_call.1} parent=15 // pred_fallthru
          _
        // Predicated region
        $region21: #{tpu_custom_call.1} parent=15 // pred_check
          %p270 = pneg %p89
        $region22: #{tpu_custom_call.1} parent=15 // pred_check_branch
          %272 = sbr.rel (%p270) target = $region24
        $region23: #{tpu_custom_call.1} parent=15 // pred_region
          %s273 = sand.u32 %s25, 1
          %s274 = scalar_lea.sflag [#allocation7], %s273
          %s275 = sand.u32 %s79, 1
          %s276 = smul.addr %s275, 8
          %s277 = scalar_lea.vmem [#allocation6], %s276
          %s278 = sshra.s32 %s25, 7
          %s279 = sand.u32 %s25, 127
          %s280 = sadd.s32 %s278, 1
          %s281 = smul.u32 %s280, 128
          %s282 = sshra.s32 %s25, 7
          %s283 = sand.u32 %s25, 127
          %s284 = sadd.s32 %s281, %s283
          %s285 = sld [smem:[#allocation3 + %s284]]
          %s287 = ssub.s32 128, 128
          %288 = vsyncadd %s274, %s287
          %s289 = smul.addr %s285, 128
          %s290 = scalar_lea.hbm %s2, %s289
          %s292 = sshll.u32 %s277, 4
          %s293 = int_to_ptr.vmem [resolvable:$true] %s292
          %295 = dma.hbm_to_vmem [thread:$0]  %s290, 128, %s293, %s274
        $region24: #{tpu_custom_call.1} parent=15 // pred_fallthru
          _
        // Predicated region
        $region25: #{tpu_custom_call.1} parent=15 // pred_check
          %p296 = pneg %p131
        $region26: #{tpu_custom_call.1} parent=15 // pred_check_branch
          %298 = sbr.rel (%p296) target = $region28
        $region27: #{tpu_custom_call.1} parent=15 // pred_region
          %s299 = sshra.s32 %s25, 7
          %s300 = sand.u32 %s25, 127
          %s301 = sadd.s32 %s299, 1
          %s302 = smul.u32 %s301, 128
          %s303 = sshra.s32 %s25, 7
          %s304 = sand.u32 %s25, 127
          %s305 = sadd.s32 %s302, %s304
          %s306 = sld [smem:[#allocation3 + %s305]]
          %p307 = scmp.lt.s32.totalorder %s306, 0
          %s308 = scalar_select %p307, %s306, 0
          %s309 = smul.addr %s308, 8
          %s310 = scalar_lea.vmem %s3, %s309
          %s311 = sshra.s32 %s25, 7
          %s312 = sand.u32 %s25, 127
          %s313 = sadd.s32 %s311, 1
          %s314 = smul.u32 %s313, 128
          %s315 = sshra.s32 %s25, 7
          %s316 = sand.u32 %s25, 127
          %s317 = sadd.s32 %s314, %s316
          %s318 = sld [smem:[#allocation3 + %s317]]
        $region28: #{tpu_custom_call.1} parent=15 // pred_fallthru
          _
        // Predicated region
        $region29: #{tpu_custom_call.1} parent=15 // pred_check
          %p319 = pneg %p173
        $region30: #{tpu_custom_call.1} parent=15 // pred_check_branch
          %321 = sbr.rel (%p319) target = $region32
        $region31: #{tpu_custom_call.1} parent=15 // pred_region
          %s322 = sand.u32 %s25, 1
          %s323 = scalar_lea.sflag [#allocation7], %s322
          %s324 = sand.u32 %s163, 1
          %s325 = smul.addr %s324, 8
          %s326 = scalar_lea.vmem [#allocation8], %s325
          %s327 = sshra.s32 %s25, 7
          %s328 = sand.u32 %s25, 127
          %s329 = sadd.s32 %s327, 1
          %s330 = smul.u32 %s329, 128
          %s331 = sshra.s32 %s25, 7
          %s332 = sand.u32 %s25, 127
          %s333 = sadd.s32 %s330, %s332
          %s334 = sld [smem:[#allocation3 + %s333]]
          %s336 = ssub.s32 128, 128
          %337 = vsyncadd %s323, %s336
          %s338 = smul.addr %s334, 128
          %s339 = scalar_lea.hbm %s4, %s338
          %s341 = sshll.u32 %s326, 4
          %s342 = int_to_ptr.vmem [resolvable:$true] %s341
          %344 = dma.hbm_to_vmem [thread:$0]  %s339, 128, %s342, %s323
        $region32: #{tpu_custom_call.1} parent=15 // pred_fallthru
          _
        // Predicated region
        $region33: #{tpu_custom_call.1} parent=15 // pred_check
          %p345 = pneg %p201
        $region34: #{tpu_custom_call.1} parent=15 // pred_check_branch
          %347 = sbr.rel (%p345) target = $region36
        $region35: #{tpu_custom_call.1} parent=15 // pred_region
          %s348 = sand.u32 %s191, 1
          %s349 = scalar_lea.sflag [#allocation10], %s348
          %s350 = sand.u32 %s191, 1
          %s351 = smul.addr %s350, 32
          %s352 = scalar_lea.vmem [#allocation9], %s351
          %s353 = sld [smem:[#allocation3 + %s25]]
          %s355 = ssub.s32 512, 512
          %356 = vsyncadd %s349, %s355
          %s357 = smul.addr %s353, 4
          %s358 = smul.addr %s357, 128
          %s359 = scalar_lea.hbm %s5, %s358
          %s360 = sshll.u32 %s352, 4
          %s361 = int_to_ptr.vmem [resolvable:$true] %s360
          %366 = dma.hbm_to_vmem [thread:$0]  %s359, 512, %s361, %s349, 128, 128, 8
        $region36: #{tpu_custom_call.1} parent=15 // pred_fallthru
          _
      $region16: #{tpu_custom_call.1} parent=5 // pred_fallthru
        _
      %p367 = scmp.le.s32.totalorder 1, %s25
      %p368 = scmp.lt.s32.totalorder %s25, 6
      %p369 = pnand %p367, %p368
      %p370 = pneg %p369
      // Predicated region
      $region37: #{tpu_custom_call.1} parent=5 // pred_check
        _
      $region38: #{tpu_custom_call.1} parent=5 // pred_check_branch
        %372 = sbr.rel (%p369) target = $region40
      $region39: #{tpu_custom_call.1} parent=5 // pred_region
        %s373 = ssub.s32 %s25, 1
        %s374 = sand.u32 %s40, 1
        %s375 = scalar_lea.sflag [#allocation5], %s374
        %s376 = sand.u32 %s40, 1
        %s377 = scalar_lea.vmem [#allocation4], %s376
        // Predicated region
        $region41: #{tpu_custom_call.1} parent=39 // pred_check
          %p378 = pneg %p53
        $region42: #{tpu_custom_call.1} parent=39 // pred_check_branch
          %380 = sbr.rel (%p378) target = $region44
        $region43: #{tpu_custom_call.1} parent=39 // pred_region
          %381 = dma.done %s375, 16
        $region44: #{tpu_custom_call.1} parent=39 // pred_fallthru
          _
        %s382 = sand.u32 %s30, 1
        %s383 = scalar_lea.sflag [#allocation7], %s382
        %s384 = sand.u32 %s82, 1
        %s385 = smul.addr %s384, 8
        %s386 = scalar_lea.vmem [#allocation6], %s385
        // Predicated region
        $region45: #{tpu_custom_call.1} parent=39 // pred_check
          %p387 = pneg %p95
        $region46: #{tpu_custom_call.1} parent=39 // pred_check_branch
          %389 = sbr.rel (%p387) target = $region48
        $region47: #{tpu_custom_call.1} parent=39 // pred_region
          %390 = dma.done %s383, 128
        $region48: #{tpu_custom_call.1} parent=39 // pred_fallthru
          _
        %s391 = sand.u32 %s30, 1
        %s392 = scalar_lea.sflag [#allocation7], %s391
        %s393 = sand.u32 %s166, 1
        %s394 = smul.addr %s393, 8
        %s395 = scalar_lea.vmem [#allocation8], %s394
        // Predicated region
        $region49: #{tpu_custom_call.1} parent=39 // pred_check
          %p396 = pneg %p179
        $region50: #{tpu_custom_call.1} parent=39 // pred_check_branch
          %398 = sbr.rel (%p396) target = $region52
        $region51: #{tpu_custom_call.1} parent=39 // pred_region
          %399 = dma.done %s392, 128
        $region52: #{tpu_custom_call.1} parent=39 // pred_fallthru
          _
        %s400 = sand.u32 %s194, 1
        %s401 = scalar_lea.sflag [#allocation10], %s400
        %s402 = sand.u32 %s194, 1
        %s403 = smul.addr %s402, 32
        %s404 = scalar_lea.vmem [#allocation9], %s403
        // Predicated region
        $region53: #{tpu_custom_call.1} parent=39 // pred_check
          %p405 = pneg %p207
        $region54: #{tpu_custom_call.1} parent=39 // pred_check_branch
          %407 = sbr.rel (%p405) target = $region56
        $region55: #{tpu_custom_call.1} parent=39 // pred_region
          %408 = dma.done %s401, 512
        $region56: #{tpu_custom_call.1} parent=39 // pred_fallthru
          _
        %s409 = sand.u32 %s40, 1
        %s410 = scalar_lea.sflag [#allocation5], %s409
        %s411 = sand.u32 %s40, 1
        %s412 = scalar_lea.vmem [#allocation4], %s411
        %p413 = pneg %p53
        %p414 = pneg %p50
        %s415 = sand.u32 %s30, 1
        %s416 = scalar_lea.sflag [#allocation7], %s415
        %s417 = sand.u32 %s82, 1
        %s418 = smul.addr %s417, 8
        %s419 = scalar_lea.vmem [#allocation6], %s418
        %p420 = pneg %p95
        %p421 = pneg %p92
        %s422 = sshra.s32 %s30, 7
        %s423 = sand.u32 %s30, 127
        %s424 = sadd.s32 %s422, 1
        %s425 = smul.u32 %s424, 128
        %s426 = sshra.s32 %s30, 7
        %s427 = sand.u32 %s30, 127
        %s428 = sadd.s32 %s425, %s427
        %s429 = sld [smem:[#allocation3 + %s428]]
        %p430 = scmp.lt.s32.totalorder %s429, 0
        %s431 = scalar_select %p430, %s429, 0
        %s432 = smul.addr %s431, 8
        %s433 = scalar_lea.vmem %s3, %s432
        %p434 = pneg %p137
        %p435 = pneg %p134
        %s436 = sand.u32 %s30, 1
        %s437 = scalar_lea.sflag [#allocation7], %s436
        %s438 = sand.u32 %s166, 1
        %s439 = smul.addr %s438, 8
        %s440 = scalar_lea.vmem [#allocation8], %s439
        %p441 = pneg %p179
        %p442 = pneg %p176
        %s443 = sand.u32 %s194, 1
        %s444 = scalar_lea.sflag [#allocation10], %s443
        %s445 = sand.u32 %s194, 1
        %s446 = smul.addr %s445, 32
        %s447 = scalar_lea.vmem [#allocation9], %s446
        %p448 = pneg %p207
        %p449 = pneg %p204
        %p450 = pneg %p233
        %p451 = pneg %p230
        %p452 = scmp.lt.s32.totalorder %s30, 4
        %s453 = scalar_select %p452, %s30, 4
        %s454 = scalar_lea.vmem %s6, %s453
        %s455 = sld [smem:[#allocation3 + %s30]]
        %s456 = sshra.s32 %s30, 7
        %s457 = sand.u32 %s30, 127
        %s458 = sadd.s32 %s456, 1
        %s459 = smul.u32 %s458, 128
        %s460 = sshra.s32 %s30, 7
        %s461 = sand.u32 %s30, 127
        %s462 = sadd.s32 %s459, %s461
        %s463 = sld [smem:[#allocation3 + %s462]]
        %s464 = sshra.s32 %s30, 7
        %s465 = sand.u32 %s30, 127
        %s466 = sadd.s32 %s464, 1
        %s467 = smul.u32 %s466, 128
        %s468 = sshra.s32 %s30, 7
        %s469 = sand.u32 %s30, 127
        %s470 = sadd.s32 %s467, %s469
        %s471 = sld [smem:[#allocation3 + %s470]]
        %p472 = scmp.lt.s32.totalorder %s471, 0
        %s473 = scalar_select %p472, %s471, 0
        %s474 = smul.addr %s473, 8
        %s475 = scalar_lea.vmem %s3, %s474
        %s476 = sshra.s32 %s30, 7
        %s477 = sand.u32 %s30, 127
        %s478 = sadd.s32 %s476, 1
        %s479 = smul.u32 %s478, 128
        %s480 = sshra.s32 %s30, 7
        %s481 = sand.u32 %s30, 127
        %s482 = sadd.s32 %s479, %s481
        %s483 = sld [smem:[#allocation3 + %s482]]
        %s484 = sshra.s32 %s30, 7
        %s485 = sand.u32 %s30, 127
        %s486 = sadd.s32 %s484, 1
        %s487 = smul.u32 %s486, 128
        %s488 = sshra.s32 %s30, 7
        %s489 = sand.u32 %s30, 127
        %s490 = sadd.s32 %s487, %s489
        %s491 = sld [smem:[#allocation3 + %s490]]
        %s492 = sld [smem:[#allocation3 + %s30]]
        %p493 = scmp.lt.s32.totalorder %s30, 4
        %s494 = scalar_select %p493, %s30, 4
        %s495 = scalar_lea.vmem %s6, %s494
        %s496 = sshra.s32 %s30, 7
        %s497 = sand.u32 %s30, 127
        %s498 = sadd.s32 %s496, 1
        %s499 = smul.u32 %s498, 128
        %s500 = sshra.s32 %s30, 7
        %s501 = sand.u32 %s30, 127
        %s502 = sadd.s32 %s499, %s501
        %s503 = sld [smem:[#allocation3 + %s502]]
        %s504 = sadd.s32 %s496, 2
        %s505 = smul.u32 %s504, 128
        %s506 = sadd.s32 %s505, %s501
        %s507 = sld [smem:[#allocation3 + %s506]]
        %s508 = sadd.s32 %s496, 3
        %s509 = smul.u32 %s508, 128
        %s510 = sadd.s32 %s509, %s501
        %s511 = sld [smem:[#allocation3 + %s510]]
        %v512 = vld [vmem:[%s404] sm:$0xff]
        %v513 = vld [vmem:[%s404 + $0x8] sm:$0xff]
        %v514 = vld [vmem:[%s404 + $0x10] sm:$0xff]
        %v515 = vld [vmem:[%s404 + $0x18] sm:$0xff]
        %v516 = vld [vmem:[%s386] sm:$0xff]
        %vm517 = vcmask 261120
        %v519 = vsel %vm517, %v516, 0
        %521 = vmatprep.subr.mxu0 0.0
        %522 = vmatpush1.msra.mxu0 %v512
        %523 = vmatprep.subr.mxu0 0.0
        %524 = vmatpush1.msra.mxu0 %v513
        %525 = vmatprep.subr.mxu0 0.0
        %526 = vmatpush1.msra.mxu0 %v514
        %527 = vmatprep.subr.mxu0 0.0
        %528 = vmatpush1.msra.mxu0 %v515
        %529 = vmatprep.subr.mxu0 0.0
        %530 = vmatpush1.msra.mxu0 0.0
        %531 = vmatprep.subr.mxu0 0.0
        %532 = vmatpush1.msra.mxu0 0.0
        %533 = vmatprep.subr.mxu0 0.0
        %534 = vmatpush1.msra.mxu0 0.0
        %535 = vmatprep.subr.mxu0 0.0
        %536 = vmatpush1.msra.mxu0 0.0
        %537 = vmatprep.subr.mxu0 0.0
        %538 = vmatpush1.msra.mxu0 0.0
        %539 = vmatprep.subr.mxu0 0.0
        %540 = vmatpush1.msra.mxu0 0.0
        %541 = vmatprep.subr.mxu0 0.0
        %542 = vmatpush1.msra.mxu0 0.0
        %543 = vmatprep.subr.mxu0 0.0
        %544 = vmatpush1.msra.mxu0 0.0
        %545 = vmatprep.subr.mxu0 0.0
        %546 = vmatpush1.msra.mxu0 0.0
        %547 = vmatprep.subr.mxu0 0.0
        %548 = vmatpush1.msra.mxu0 0.0
        %549 = vmatprep.subr.mxu0 0.0
        %550 = vmatpush1.msra.mxu0 0.0
        %551 = vmatprep.subr.mxu0 0.0
        %552 = vmatpush1.msra.mxu0 0.0
        %553 = vmatprep.subr.mxu0 0.0
        %554 = vmatpush1.msra.mxu0 0.0
        %555 = vmatprep.subr.mxu0 0.0
        %556 = vmatpush1.msra.mxu0 0.0
        %557 = vmatprep.subr.mxu0 0.0
        %558 = vmatpush1.msra.mxu0 0.0
        %559 = vmatprep.subr.mxu0 0.0
        %560 = vmatpush1.msra.mxu0 0.0
        %561 = vmatprep.subr.mxu0 0.0
        %562 = vmatpush1.msra.mxu0 0.0
        %563 = vmatprep.subr.mxu0 0.0
        %564 = vmatpush1.msra.mxu0 0.0
        %565 = vmatprep.subr.mxu0 0.0
        %566 = vmatpush1.msra.mxu0 0.0
        %567 = vmatprep.subr.mxu0 0.0
        %568 = vmatpush1.msra.mxu0 0.0
        %569 = vmatprep.subr.mxu0 0.0
        %570 = vmatpush1.msra.mxu0 0.0
        %571 = vmatprep.subr.mxu0 0.0
        %572 = vmatpush1.msra.mxu0 0.0
        %573 = vmatprep.subr.mxu0 0.0
        %574 = vmatpush1.msra.mxu0 0.0
        %575 = vmatprep.subr.mxu0 0.0
        %576 = vmatpush1.msra.mxu0 0.0
        %577 = vmatprep.subr.mxu0 0.0
        %578 = vmatpush1.msra.mxu0 0.0
        %579 = vmatprep.subr.mxu0 0.0
        %580 = vmatpush1.msra.mxu0 0.0
        %581 = vmatprep.subr.mxu0 0.0
        %582 = vmatpush1.msra.mxu0 0.0
        %583 = vmatprep.subr.mxu0 0.0
        %584 = vmatpush1.msra.mxu0 0.0
        %585 = vmatprep.mubr.f32.mxu0 0.0
        %586 = vmatmul.mubr.f32.gmra.mrb[0].mxu0 %v519
        %v587 = vpop.f32.mrb[0].mxu0
        %v588 = vadd.f32 0.0, %v587
        %v589 = vpop.f32.mrb[0].mxu0
        %590 = vdwg.mxu0
        %v591 = vld [vmem:[%s475] sm:$0xff]
        %v593 = vsel %vm517, %v591, 0
        %595 = vmatprep.subr.mxu0 0.0
        %596 = vmatpush1.msra.mxu0 %v512
        %597 = vmatprep.subr.mxu0 0.0
        %598 = vmatpush1.msra.mxu0 %v513
        %599 = vmatprep.subr.mxu0 0.0
        %600 = vmatpush1.msra.mxu0 %v514
        %601 = vmatprep.subr.mxu0 0.0
        %602 = vmatpush1.msra.mxu0 %v515
        %603 = vmatprep.subr.mxu0 0.0
        %604 = vmatpush1.msra.mxu0 0.0
        %605 = vmatprep.subr.mxu0 0.0
        %606 = vmatpush1.msra.mxu0 0.0
        %607 = vmatprep.subr.mxu0 0.0
        %608 = vmatpush1.msra.mxu0 0.0
        %609 = vmatprep.subr.mxu0 0.0
        %610 = vmatpush1.msra.mxu0 0.0
        %611 = vmatprep.subr.mxu0 0.0
        %612 = vmatpush1.msra.mxu0 0.0
        %613 = vmatprep.subr.mxu0 0.0
        %614 = vmatpush1.msra.mxu0 0.0
        %615 = vmatprep.subr.mxu0 0.0
        %616 = vmatpush1.msra.mxu0 0.0
        %617 = vmatprep.subr.mxu0 0.0
        %618 = vmatpush1.msra.mxu0 0.0
        %619 = vmatprep.subr.mxu0 0.0
        %620 = vmatpush1.msra.mxu0 0.0
        %621 = vmatprep.subr.mxu0 0.0
        %622 = vmatpush1.msra.mxu0 0.0
        %623 = vmatprep.subr.mxu0 0.0
        %624 = vmatpush1.msra.mxu0 0.0
        %625 = vmatprep.subr.mxu0 0.0
        %626 = vmatpush1.msra.mxu0 0.0
        %627 = vmatprep.subr.mxu0 0.0
        %628 = vmatpush1.msra.mxu0 0.0
        %629 = vmatprep.subr.mxu0 0.0
        %630 = vmatpush1.msra.mxu0 0.0
        %631 = vmatprep.subr.mxu0 0.0
        %632 = vmatpush1.msra.mxu0 0.0
        %633 = vmatprep.subr.mxu0 0.0
        %634 = vmatpush1.msra.mxu0 0.0
        %635 = vmatprep.subr.mxu0 0.0
        %636 = vmatpush1.msra.mxu0 0.0
        %637 = vmatprep.subr.mxu0 0.0
        %638 = vmatpush1.msra.mxu0 0.0
        %639 = vmatprep.subr.mxu0 0.0
        %640 = vmatpush1.msra.mxu0 0.0
        %641 = vmatprep.subr.mxu0 0.0
        %642 = vmatpush1.msra.mxu0 0.0
        %643 = vmatprep.subr.mxu0 0.0
        %644 = vmatpush1.msra.mxu0 0.0
        %645 = vmatprep.subr.mxu0 0.0
        %646 = vmatpush1.msra.mxu0 0.0
        %647 = vmatprep.subr.mxu0 0.0
        %648 = vmatpush1.msra.mxu0 0.0
        %649 = vmatprep.subr.mxu0 0.0
        %650 = vmatpush1.msra.mxu0 0.0
        %651 = vmatprep.subr.mxu0 0.0
        %652 = vmatpush1.msra.mxu0 0.0
        %653 = vmatprep.subr.mxu0 0.0
        %654 = vmatpush1.msra.mxu0 0.0
        %655 = vmatprep.subr.mxu0 0.0
        %656 = vmatpush1.msra.mxu0 0.0
        %657 = vmatprep.subr.mxu0 0.0
        %658 = vmatpush1.msra.mxu0 0.0
        %659 = vmatprep.mubr.f32.mxu0 0.0
        %660 = vmatmul.mubr.f32.gmra.mrb[0].mxu0 %v593
        %v661 = vpop.f32.mrb[0].mxu0
        %v662 = vadd.f32 0.0, %v661
        %v663 = vpop.f32.mrb[0].mxu0
        %664 = vdwg.mxu0
        %v665 = vld [vmem:[%s395] sm:$0xff]
        %v667 = vsel %vm517, %v665, 0
        %669 = vmatprep.subr.mxu0 0.0
        %670 = vmatpush1.msra.mxu0 %v512
        %671 = vmatprep.subr.mxu0 0.0
        %672 = vmatpush1.msra.mxu0 %v513
        %673 = vmatprep.subr.mxu0 0.0
        %674 = vmatpush1.msra.mxu0 %v514
        %675 = vmatprep.subr.mxu0 0.0
        %676 = vmatpush1.msra.mxu0 %v515
        %677 = vmatprep.subr.mxu0 0.0
        %678 = vmatpush1.msra.mxu0 0.0
        %679 = vmatprep.subr.mxu0 0.0
        %680 = vmatpush1.msra.mxu0 0.0
        %681 = vmatprep.subr.mxu0 0.0
        %682 = vmatpush1.msra.mxu0 0.0
        %683 = vmatprep.subr.mxu0 0.0
        %684 = vmatpush1.msra.mxu0 0.0
        %685 = vmatprep.subr.mxu0 0.0
        %686 = vmatpush1.msra.mxu0 0.0
        %687 = vmatprep.subr.mxu0 0.0
        %688 = vmatpush1.msra.mxu0 0.0
        %689 = vmatprep.subr.mxu0 0.0
        %690 = vmatpush1.msra.mxu0 0.0
        %691 = vmatprep.subr.mxu0 0.0
        %692 = vmatpush1.msra.mxu0 0.0
        %693 = vmatprep.subr.mxu0 0.0
        %694 = vmatpush1.msra.mxu0 0.0
        %695 = vmatprep.subr.mxu0 0.0
        %696 = vmatpush1.msra.mxu0 0.0
        %697 = vmatprep.subr.mxu0 0.0
        %698 = vmatpush1.msra.mxu0 0.0
        %699 = vmatprep.subr.mxu0 0.0
        %700 = vmatpush1.msra.mxu0 0.0
        %701 = vmatprep.subr.mxu0 0.0
        %702 = vmatpush1.msra.mxu0 0.0
        %703 = vmatprep.subr.mxu0 0.0
        %704 = vmatpush1.msra.mxu0 0.0
        %705 = vmatprep.subr.mxu0 0.0
        %706 = vmatpush1.msra.mxu0 0.0
        %707 = vmatprep.subr.mxu0 0.0
        %708 = vmatpush1.msra.mxu0 0.0
        %709 = vmatprep.subr.mxu0 0.0
        %710 = vmatpush1.msra.mxu0 0.0
        %711 = vmatprep.subr.mxu0 0.0
        %712 = vmatpush1.msra.mxu0 0.0
        %713 = vmatprep.subr.mxu0 0.0
        %714 = vmatpush1.msra.mxu0 0.0
        %715 = vmatprep.subr.mxu0 0.0
        %716 = vmatpush1.msra.mxu0 0.0
        %717 = vmatprep.subr.mxu0 0.0
        %718 = vmatpush1.msra.mxu0 0.0
        %719 = vmatprep.subr.mxu0 0.0
        %720 = vmatpush1.msra.mxu0 0.0
        %721 = vmatprep.subr.mxu0 0.0
        %722 = vmatpush1.msra.mxu0 0.0
        %723 = vmatprep.subr.mxu0 0.0
        %724 = vmatpush1.msra.mxu0 0.0
        %725 = vmatprep.subr.mxu0 0.0
        %726 = vmatpush1.msra.mxu0 0.0
        %727 = vmatprep.subr.mxu0 0.0
        %728 = vmatpush1.msra.mxu0 0.0
        %729 = vmatprep.subr.mxu0 0.0
        %730 = vmatpush1.msra.mxu0 0.0
        %731 = vmatprep.subr.mxu0 0.0
        %732 = vmatpush1.msra.mxu0 0.0
        %733 = vmatprep.mubr.f32.mxu0 0.0
        %734 = vmatmul.mubr.f32.gmra.mrb[0].mxu0 %v667
        %v735 = vpop.f32.mrb[0].mxu0
        %v736 = vadd.f32 0.0, %v735
        %v737 = vpop.f32.mrb[0].mxu0
        %738 = vdwg.mxu0
        %v739 = vld [vmem:[%s377] sm:$0x1]
        %v740 = vmul.f32 %v739, %v739
        %vm741 = vcmask 253952
        %v742 = vsel %vm741, %v740, 0.0
        %743 = vadd.xlane.f32.xlu0 %v742
        %v744 = vpop.xlane.xlu0 %743
        %v745 = vmax.f32 %v744, 1e-24
        %v746 = vrsqrt.pop %v745
        %v747 = vmul.f32 %v739, %v746
        %v748 = vmul.f32 %v588, %v588
        %v749 = vsel %vm517, %v748, 0.0
        %750 = vadd.xlane.f32.xlu0 %v749
        %v751 = vpop.xlane.xlu0 %750
        %v752 = vmax.f32 %v751, 1e-24
        %v753 = vrsqrt.pop %v752
        %v754 = vmul.f32 %v588, %v753
        %v755 = vmul.f32 %v662, %v662
        %v756 = vsel %vm517, %v755, 0.0
        %757 = vadd.xlane.f32.xlu0 %v756
        %v758 = vpop.xlane.xlu0 %757
        %v759 = vmax.f32 %v758, 1e-24
        %v760 = vrsqrt.pop %v759
        %v761 = vmul.f32 %v662, %v760
        %v762 = vmul.f32 %v736, %v736
        %v763 = vsel %vm517, %v762, 0.0
        %764 = vadd.xlane.f32.xlu0 %v763
        %v765 = vpop.xlane.xlu0 %764
        %v766 = vmax.f32 %v765, 1e-24
        %v767 = vrsqrt.pop %v766
        %v768 = vmul.f32 %v736, %v767
        %v770 = vlaneseq
        %v771 = vshrl.u32 %v770, 7
        %v772 = vsub.s32 0, %v771
        %v773 = vrot.slane %v747, %v772
        %v775 = vadd.f32 %v754, %v773
        %v776 = vsub.f32 %v775, %v761
        %v777 = vsub.f32 %v775, %v768
        %v778 = vmul.f32 %v776, %v776
        %v779 = vsel %vm517, %v778, 0.0
        %780 = vadd.xlane.f32.xlu0 %v779
        %v781 = vpop.xlane.xlu0 %780
        %v782 = vmul.f32 %v777, %v777
        %v783 = vsel %vm517, %v782, 0.0
        %784 = vadd.xlane.f32.xlu0 %v783
        %v785 = vpop.xlane.xlu0 %784
        %v786 = vsub.f32 %v785, %v781
        %v787 = vmin.f32 %v786, 0.0
        %v788 = vand.u32 2147483647, %v786
        %v789 = vsub.f32 0.0, %v788
        %v790 = vmul.f32 %v789, 1.442695
        %v791 = vpow.pop %v790
        %v792 = vadd.f32 %v791, 1.0
        %v793 = vlog2.pop %v792
        %v794 = vmul.f32 %v793, 0.6931472
        %v795 = vmul.f32 -0.5, %v791
        %v796 = vadd.f32 %v795, 1.0
        %v797 = vmul.f32 %v796, %v791
        %v798 = vand.u32 2147483647, %v791
        %vm799 = vcmp.lt.f32.partialorder %v798, 0.0004427343
        %v800 = vsel %vm799, %v797, %v794
        %v801 = vsub.f32 %v787, %v800
        %v802 = vsub.f32 0.0, %v801
        %v803 = vmul.f32 %v754, %v754
        %v804 = vsel %vm517, %v803, 0.0
        %805 = vadd.xlane.f32.xlu0 %v804
        %v806 = vpop.xlane.xlu0 %805
        %v807 = vmul.f32 %v747, %v747
        %v808 = vsel %vm741, %v807, 0.0
        %809 = vadd.xlane.f32.xlu0 %v808
        %v810 = vpop.xlane.xlu0 %809
        %v811 = vlaneseq
        %v812 = vshrl.u32 %v811, 7
        %v813 = vsub.s32 0, %v812
        %v814 = vrot.slane %v810, %v813
        %v815 = vadd.f32 %v806, %v814
        %v816 = vmul.f32 %v761, %v761
        %v817 = vsel %vm517, %v816, 0.0
        %818 = vadd.xlane.f32.xlu0 %v817
        %v819 = vpop.xlane.xlu0 %818
        %v820 = vadd.f32 %v815, %v819
        %v821 = vmul.f32 %v768, %v768
        %v822 = vsel %vm517, %v821, 0.0
        %823 = vadd.xlane.f32.xlu0 %v822
        %v824 = vpop.xlane.xlu0 %823
        %v825 = vadd.f32 %v820, %v824
        %v826 = vmul.f32 %v825, 0.5
        %v827 = vmul.f32 %v826, 0.0001
        %v828 = vadd.f32 %v802, %v827
        %s829 = smul.u32 %s503, 8
        %v830 = vlaneseq
        %v831 = vshrl.u32 %v830, 7
        %v832 = vstv %s829
        %v833 = vadd.s32 %v832, %v831
        %v834 = vstv %s507
        %vm835 = vcmp.ge.s32.totalorder %v833, %v834
        %v836 = vstv %s511
        %vm837 = vcmp.lt.s32.totalorder %v833, %v836
        %vm838 = vmand %vm835, %vm837
        %v839 = vsel %vm838, %v828, 0.0
        %v840 = vrot.slane %v839, 4
        %v841 = vadd.f32 %v839, %v840
        %v842 = vrot.slane %v841, 2
        %v843 = vadd.f32 %v841, %v842
        %v844 = vrot.slane %v843, 1
        %v845 = vadd.f32 %v843, %v844
        %vm846 = vcmask 0
        %847 = vst.msk [vmem:[%s495] sm:$0x1] %vm846, %v845
        %p848 = scmp.lt.s32.totalorder %s30, 4
        %s849 = scalar_select %p848, %s30, 4
        %s850 = scalar_lea.vmem %s6, %s849
        // Predicated region
        $region57: #{tpu_custom_call.1} parent=39 // pred_check
          %p851 = pneg %p230
        $region58: #{tpu_custom_call.1} parent=39 // pred_check_branch
          %853 = sbr.rel (%p851) target = $region60
        $region59: #{tpu_custom_call.1} parent=39 // pred_region
          _
        $region60: #{tpu_custom_call.1} parent=39 // pred_fallthru
          _
      $region40: #{tpu_custom_call.1} parent=5 // pred_fallthru
        _
      %p854 = scmp.le.s32.totalorder 2, %s25
      // Predicated region
      $region61: #{tpu_custom_call.1} parent=5 // pred_check
        %p855 = pneg %p854
      $region62: #{tpu_custom_call.1} parent=5 // pred_check_branch
        %857 = sbr.rel (%p855) target = $region64
      $region63: #{tpu_custom_call.1} parent=5 // pred_region
        %s858 = ssub.s32 %s25, 2
        // Predicated region
        $region65: #{tpu_custom_call.1} parent=63 // pred_check
          %p859 = pneg %p236
        $region66: #{tpu_custom_call.1} parent=63 // pred_check_branch
          %861 = sbr.rel (%p859) target = $region68
        $region67: #{tpu_custom_call.1} parent=63 // pred_region
          %p862 = scmp.lt.s32.totalorder %s31, 4
          %s863 = scalar_select %p862, %s31, 4
          %s864 = scalar_lea.vmem %s6, %s863
        $region68: #{tpu_custom_call.1} parent=63 // pred_fallthru
          _
      $region64: #{tpu_custom_call.1} parent=5 // pred_fallthru
        _
    $region6: #{tpu_custom_call.1} parent=1 // loop_footer
      %s29 = sadd.s32 1, %s25
    $region7: #{tpu_custom_call.1} parent=1 // loop_footer_branch
      %24 = sbr.rel target = $region3
    $region8: #{tpu_custom_call.1} parent=1 // loop_exit
      _
    %865 = vsyncpa [#allocation5], 1
    %s866 = scalar_lea.sflag [#allocation5], 1
    %867 = vsyncpa %s866, 1
    %868 = vsyncpa [#allocation7], 1
    %s869 = scalar_lea.sflag [#allocation7], 1
    %870 = vsyncpa %s869, 1
    %871 = vsyncpa [#allocation10], 1
    %s872 = scalar_lea.sflag [#allocation10], 1
    %873 = vsyncpa %s872, 1

</llo_original>
